<compile_context>
chip_gen: v6e
topology: v6e:2x2x1
jax: 0.10.0
libtpu: 0.0.40
codegen_flags: <defaults>
</compile_context>

<pallas_src>
import jax
import jax.numpy as jnp
from jax.experimental import pallas as pl
from jax.experimental.pallas import tpu as pltpu

MAX_TN = 65536  # points per grid step; (8, TN) f32 tile = 2 MiB, x2 bufs in/out = 8 MiB VMEM


def _round_up(x, m):
    return ((x + m - 1) // m) * m


def _box_sdf_kernel(center_ref, half_ref, pts_ref, out_ref):
    """center_ref, half_ref: SMEM f32[3];  pts_ref: VMEM (3, TN);  out_ref: VMEM (1, TN)."""
    x = pts_ref[...]  # single load of the whole tile (3, TN)

    d0 = jnp.abs(x[0:1, :] - center_ref[0]) - half_ref[0]
    d1 = jnp.abs(x[1:2, :] - center_ref[1]) - half_ref[1]
    d2 = jnp.abs(x[2:3, :] - center_ref[2]) - half_ref[2]

    c0 = jnp.maximum(d0, 0.0)
    c1 = jnp.maximum(d1, 0.0)
    c2 = jnp.maximum(d2, 0.0)
    sq = c0 * c0 + c1 * c1 + c2 * c2             # sum over coords of max(diff,0)^2
    mx = jnp.maximum(jnp.maximum(d0, d1), d2)    # max over coords of diff

    out_ref[...] = jnp.sqrt(sq) + jnp.minimum(mx, 0.0)


def box_sdf(points, center, side_lengths, *, max_tn=MAX_TN):
    """points: any shape (..., 3) float32; center, side_lengths: (1, 3) float32.

    Returns (N, 1) float32 where N = prod(points.shape) // 3, matching the
    PyTorch module's `points.view(-1, 3)` semantics.
    """
    pts = points.reshape(-1, 3).astype(jnp.float32)
    n = pts.shape[0]

    # Single layout change: AoS (N, 3) -> SoA (3, N).  No explicit padding;
    # Pallas masks the partial last block.
    pts_t = pts.T  # (3, N)

    c = center.reshape(3).astype(jnp.float32)
    h = (side_lengths.reshape(3) * 0.5).astype(jnp.float32)

    tn = min(max_tn, _round_up(n, 128))  # big tiles, but never bigger than needed
    grid = (pl.cdiv(n, tn),)

    out = pl.pallas_call(
        _box_sdf_kernel,
        out_shape=jax.ShapeDtypeStruct((1, n), jnp.float32),
        grid_spec=pltpu.PrefetchScalarGridSpec(
            num_scalar_prefetch=0,
            grid=grid,
            in_specs=[
                pl.BlockSpec(memory_space=pltpu.SMEM),    # center (3,)
                pl.BlockSpec(memory_space=pltpu.SMEM),    # half side lengths (3,)
                pl.BlockSpec((3, tn), lambda i: (0, i)),  # points tile (SoA)
            ],
            out_specs=pl.BlockSpec((1, tn), lambda i: (0, i)),
        ),
        compiler_params=pltpu.CompilerParams(
            dimension_semantics=("parallel",),
        ),
        cost_estimate=pl.CostEstimate(
            flops=20 * n, transcendentals=n, bytes_accessed=16 * n
        ),
    )(c, h, pts_t)

    return out.reshape(n, 1)


def box_sdf_ref(points, center, side_lengths):
    """Pure-JAX reference mirroring the PyTorch forward."""
    pts = points.reshape(-1, 3)
    diff = jnp.abs(pts - center) - side_lengths / 2.0
    sd = jnp.linalg.norm(jnp.maximum(diff, 0.0), axis=-1) + jnp.minimum(
        jnp.max(diff, axis=-1), 0.0
    )
    return sd[:, None]


if __name__ == "__main__":
    key = jax.random.PRNGKey(0)

    # Deterministic "cfg" parameters (shapes from __init__: (1, 3) each).
    center = jnp.array([[0.1, -0.2, 0.3]], dtype=jnp.float32)
    side_lengths = jnp.array([[2.0, 1.5, 1.0]], dtype=jnp.float32)

    # Test 1: batch of 2 x 64 points in 3D -> flattened N = 128 (single full block).
    k1, k2 = jax.random.split(key)
    points = jax.random.normal(k1, (2, 64, 3), dtype=jnp.float32) * 2.0
    out = jax.block_until_ready(box_sdf(points, center, side_lengths))
    ref = box_sdf_ref(points, center, side_lengths)
    assert out.shape == (128, 1), out.shape
    assert jnp.allclose(out, ref, atol=1e-5, rtol=1e-5), float(
        jnp.max(jnp.abs(out - ref))
    )

    # Test 2: N = 300 (not a multiple of 128) with a forced small tile so the
    # grid has multiple steps AND a masked partial last block.
    points2 = jax.random.normal(k2, (300, 3), dtype=jnp.float32) * 2.0
    out2 = jax.block_until_ready(box_sdf(points2, center, side_lengths, max_tn=128))
    ref2 = box_sdf_ref(points2, center, side_lengths)
    assert out2.shape == (300, 1), out2.shape
    assert jnp.allclose(out2, ref2, atol=1e-5, rtol=1e-5), float(
        jnp.max(jnp.abs(out2 - ref2))
    )

    # Test 3: same N = 300 with the default (large) tile -> single partial block.
    out3 = jax.block_until_ready(box_sdf(points2, center, side_lengths))
    assert jnp.allclose(out3, ref2, atol=1e-5, rtol=1e-5), float(
        jnp.max(jnp.abs(out3 - ref2))
    )

    print("KERNEL_OK")
</pallas_src>

<mosaic_0001>
module attributes {stable_mosaic.version = 11 : i64} {
  func.func @_box_sdf_kernel(%arg0: i32, %arg1: memref<3xf32, #tpu.memory_space<smem>>, %arg2: memref<3xf32, #tpu.memory_space<smem>>, %arg3: memref<3x128xf32, #tpu.memory_space<vmem>>, %arg4: memref<1x128xf32, #tpu.memory_space<vmem>>) attributes {dimension_semantics = [#tpu.dimension_semantics<parallel>], iteration_bounds = array<i64: 1>, scalar_prefetch = 0 : i64, scratch_operands = 0 : i64, tpu.core_type = #tpu.core_type<tc>, window_params = [{transform_indices = @transform_0, window_bounds = array<i64: 3>}, {transform_indices = @transform_1, window_bounds = array<i64: 3>}, {transform_indices = @transform_2, window_bounds = array<i64: 3, 128>}, {transform_indices = @transform_3, window_bounds = array<i64: 1, 128>}]} {
    %c0 = arith.constant 0 : index
    %c0_0 = arith.constant 0 : index
    %0 = vector.load %arg3[%c0, %c0_0] : memref<3x128xf32, #tpu.memory_space<vmem>>, vector<3x128xf32>
    %1 = vector.extract_strided_slice %0 {offsets = [0, 0], sizes = [1, 128], strides = [1, 1]} : vector<3x128xf32> to vector<1x128xf32>
    %c0_1 = arith.constant 0 : index
    %2 = memref.load %arg1[%c0_1] : memref<3xf32, #tpu.memory_space<smem>>
    %3 = vector.broadcast %2 : f32 to vector<1x128xf32>
    %4 = arith.subf %1, %3 : vector<1x128xf32>
    %5 = math.absf %4 : vector<1x128xf32>
    %c0_2 = arith.constant 0 : index
    %6 = memref.load %arg2[%c0_2] : memref<3xf32, #tpu.memory_space<smem>>
    %7 = vector.broadcast %6 : f32 to vector<1x128xf32>
    %8 = arith.subf %5, %7 : vector<1x128xf32>
    %9 = vector.extract_strided_slice %0 {offsets = [1, 0], sizes = [1, 128], strides = [1, 1]} : vector<3x128xf32> to vector<1x128xf32>
    %c1 = arith.constant 1 : index
    %10 = memref.load %arg1[%c1] : memref<3xf32, #tpu.memory_space<smem>>
    %11 = vector.broadcast %10 : f32 to vector<1x128xf32>
    %12 = arith.subf %9, %11 : vector<1x128xf32>
    %13 = math.absf %12 : vector<1x128xf32>
    %c1_3 = arith.constant 1 : index
    %14 = memref.load %arg2[%c1_3] : memref<3xf32, #tpu.memory_space<smem>>
    %15 = vector.broadcast %14 : f32 to vector<1x128xf32>
    %16 = arith.subf %13, %15 : vector<1x128xf32>
    %17 = vector.extract_strided_slice %0 {offsets = [2, 0], sizes = [1, 128], strides = [1, 1]} : vector<3x128xf32> to vector<1x128xf32>
    %c2 = arith.constant 2 : index
    %18 = memref.load %arg1[%c2] : memref<3xf32, #tpu.memory_space<smem>>
    %19 = vector.broadcast %18 : f32 to vector<1x128xf32>
    %20 = arith.subf %17, %19 : vector<1x128xf32>
    %21 = math.absf %20 : vector<1x128xf32>
    %c2_4 = arith.constant 2 : index
    %22 = memref.load %arg2[%c2_4] : memref<3xf32, #tpu.memory_space<smem>>
    %23 = vector.broadcast %22 : f32 to vector<1x128xf32>
    %24 = arith.subf %21, %23 : vector<1x128xf32>
    %cst = arith.constant 0.000000e+00 : f32
    %25 = vector.broadcast %cst : f32 to vector<1x128xf32>
    %26 = arith.maximumf %8, %25 : vector<1x128xf32>
    %cst_5 = arith.constant 0.000000e+00 : f32
    %27 = vector.broadcast %cst_5 : f32 to vector<1x128xf32>
    %28 = arith.maximumf %16, %27 : vector<1x128xf32>
    %cst_6 = arith.constant 0.000000e+00 : f32
    %29 = vector.broadcast %cst_6 : f32 to vector<1x128xf32>
    %30 = arith.maximumf %24, %29 : vector<1x128xf32>
    %31 = arith.mulf %26, %26 : vector<1x128xf32>
    %32 = arith.mulf %28, %28 : vector<1x128xf32>
    %33 = arith.addf %31, %32 : vector<1x128xf32>
    %34 = arith.mulf %30, %30 : vector<1x128xf32>
    %35 = arith.addf %33, %34 : vector<1x128xf32>
    %36 = arith.maximumf %8, %16 : vector<1x128xf32>
    %37 = arith.maximumf %36, %24 : vector<1x128xf32>
    %38 = math.sqrt %35 : vector<1x128xf32>
    %cst_7 = arith.constant 0.000000e+00 : f32
    %39 = vector.broadcast %cst_7 : f32 to vector<1x128xf32>
    %40 = arith.minimumf %37, %39 : vector<1x128xf32>
    %41 = arith.addf %38, %40 : vector<1x128xf32>
    %c0_8 = arith.constant 0 : index
    %c0_9 = arith.constant 0 : index
    %42 = vector.load %arg4[%c0_8, %c0_9] : memref<1x128xf32, #tpu.memory_space<vmem>>, vector<1x128xf32>
    tpu.vector_store %arg4[%c0_8, %c0_9], %41 {strides = array<i32>} : memref<1x128xf32, #tpu.memory_space<vmem>>, vector<1x128xf32>,
    return
  }
  func.func @transform_0(%arg0: i32) -> i32 {
    %c0_i32 = arith.constant 0 : i32
    %c0_i32_0 = arith.constant 0 : i32
    return %c0_i32 : i32
  }
  func.func @transform_1(%arg0: i32) -> i32 {
    %c0_i32 = arith.constant 0 : i32
    %c0_i32_0 = arith.constant 0 : i32
    return %c0_i32 : i32
  }
  func.func @transform_2(%arg0: i32) -> (i32, i32) {
    %c0_i32 = arith.constant 0 : i32
    %c0_i32_0 = arith.constant 0 : i32
    return %c0_i32, %arg0 : i32, i32
  }
  func.func @transform_3(%arg0: i32) -> (i32, i32) {
    %c0_i32 = arith.constant 0 : i32
    %c0_i32_0 = arith.constant 0 : i32
    return %c0_i32, %arg0 : i32, i32
  }
}

</mosaic_0001>

<llo_original>
// kernel: tpu_custom_call.1
$region0: #{tpu_custom_call.1}
  #allocation0 [shape = 'u32[]', space=smem, size = 0x4, offset = 0x4, fixed_abs, tag = 'smem constant byte address 0x4 - core index']
  #allocation1 [shape = 'u32[144,128]{1,0:T(1,128)}', space=vmem, size = 0x12000, scoped, tag = 'internal scratch']
  %s0 = inlined_call_operand.hbm [shape: f32[3], index: 0, kind: input, shape index: {}]
  %s1 = inlined_call_operand.vmem [shape: f32[3], index: 1, kind: input, shape index: {}]
  %s2 = inlined_call_operand.hbm [shape: f32[3,128], index: 2, kind: input, shape index: {}]
  %s3 = inlined_call_operand.hbm [shape: f32[1,128], index: 3, kind: output, shape index: {}]
  %s4 = sld [smem:[#allocation0]]
  $region34: #{tpu_custom_call.1} parent=0
    _
  %s6 = ssub.s32 1, %s4
  %s7 = scalar_select 0, %s6, %s4
  $region1: #{tpu_custom_call.1} parent=0
    #allocation2 [shape = 'u8[512]{0}', space=smem, size = 0x200, scoped, tag = 'input window, operand 0, single buffered']
    #allocation3 [shape = 's32[1]{0}', space=sflag, size = 0x4, scoped, tag = 'scoped memory for tpu_custom_call.1']
    #allocation4 [shape = 's32[1]{0}', space=sflag, size = 0x4, scoped, tag = 'scoped memory for tpu_custom_call.1']
    #allocation5 [shape = 's32[1]{0}', space=sflag, size = 0x4, scoped, tag = 'scoped memory for tpu_custom_call.1']
    #allocation6 [shape = 's32[1]{0}', space=sflag, size = 0x4, scoped, tag = 'scoped memory for tpu_custom_call.1']
    #allocation7 [shape = 'u8[512]{0}', space=smem, size = 0x200, scoped, tag = 'input window, operand 1, single buffered']
    #allocation8 [shape = 'u8[2048]{0}', space=vmem, size = 0x800, scoped, tag = 'input window, operand 2, single buffered']
    #allocation9 [shape = 'u8[512]{0}', space=vmem, size = 0x400, scoped, tag = 'output window, operand 0, single buffered']
    %8 = vsyncpa [#allocation5], 0
    %9 = vsyncpa [#allocation6], 0
    %10 = vsyncpa [#allocation3], 0
    %11 = vsyncpa [#allocation4], 0
    // Predicated region
    $region2: #{tpu_custom_call.1} parent=1 // pred_check
      _
    $region3: #{tpu_custom_call.1} parent=1 // pred_check_branch
      %13 = sbr.rel (0) target = $region5
    $region4: #{tpu_custom_call.1} parent=1 // pred_region
      %s15 = ssub.s32 16, 16
      %16 = vsyncadd [#allocation5], %s15
      %19 = dma.hbm_to_smem %s0, 16, [#allocation2], [#allocation5]
    $region5: #{tpu_custom_call.1} parent=1 // pred_fallthru
      _
    // Predicated region
    $region6: #{tpu_custom_call.1} parent=1 // pred_check
      _
    $region7: #{tpu_custom_call.1} parent=1 // pred_check_branch
      %21 = sbr.rel (0) target = $region9
    $region8: #{tpu_custom_call.1} parent=1 // pred_region
      %s23 = ssub.s32 16, 16
      %24 = vsyncadd [#allocation6], %s23
      %s26 = sshll.u32 %s1, 4
      %s27 = int_to_ptr.vmem [resolvable:$true] %s26
      %29 = dma.vmem_to_smem %s27, 16, [#allocation7], [#allocation6]
    $region9: #{tpu_custom_call.1} parent=1 // pred_fallthru
      _
    // Predicated region
    $region10: #{tpu_custom_call.1} parent=1 // pred_check
      _
    $region11: #{tpu_custom_call.1} parent=1 // pred_check_branch
      %31 = sbr.rel (0) target = $region13
    $region12: #{tpu_custom_call.1} parent=1 // pred_region
      %s33 = ssub.s32 64, 64
      %34 = vsyncadd [#allocation3], %s33
      %s36 = sshll.u32 [#allocation8], 4
      %s37 = int_to_ptr.vmem [resolvable:$true] %s36
      %39 = dma.hbm_to_vmem [thread:$0]  %s2, 64, %s37, [#allocation3]
    $region13: #{tpu_custom_call.1} parent=1 // pred_fallthru
      _
    // Predicated region
    $region14: #{tpu_custom_call.1} parent=1 // pred_check
      _
    $region15: #{tpu_custom_call.1} parent=1 // pred_check_branch
      %41 = sbr.rel (0) target = $region17
    $region16: #{tpu_custom_call.1} parent=1 // pred_region
      %42 = dma.done [#allocation5], 16
    $region17: #{tpu_custom_call.1} parent=1 // pred_fallthru
      _
    // Predicated region
    $region18: #{tpu_custom_call.1} parent=1 // pred_check
      _
    $region19: #{tpu_custom_call.1} parent=1 // pred_check_branch
      %44 = sbr.rel (0) target = $region21
    $region20: #{tpu_custom_call.1} parent=1 // pred_region
      %45 = dma.done [#allocation6], 16
    $region21: #{tpu_custom_call.1} parent=1 // pred_fallthru
      _
    // Predicated region
    $region22: #{tpu_custom_call.1} parent=1 // pred_check
      _
    $region23: #{tpu_custom_call.1} parent=1 // pred_check_branch
      %47 = sbr.rel (0) target = $region25
    $region24: #{tpu_custom_call.1} parent=1 // pred_region
      %48 = dma.done [#allocation3], 64
    $region25: #{tpu_custom_call.1} parent=1 // pred_fallthru
      _
    %49 = sfence
    %v50 = vld [vmem:[#allocation8] sm:$0x7]
    %s51 = sld [smem:[#allocation2]]
    %v52 = vstv %s51
    %v53 = vsub.f32 %v50, %v52
    %v54 = vand.u32 2147483647, %v53
    %s55 = sld [smem:[#allocation7]]
    %v56 = vstv %s55
    %v57 = vsub.f32 %v54, %v56
    %s58 = sld [smem:[#allocation2 + $0x1]]
    %v59 = vstv %s58
    %v60 = vsub.f32 %v50, %v59
    %v61 = vand.u32 2147483647, %v60
    %s62 = sld [smem:[#allocation7 + $0x1]]
    %v63 = vstv %s62
    %v64 = vsub.f32 %v61, %v63
    %s65 = sld [smem:[#allocation2 + $0x2]]
    %v66 = vstv %s65
    %v67 = vsub.f32 %v50, %v66
    %v68 = vand.u32 2147483647, %v67
    %s69 = sld [smem:[#allocation7 + $0x2]]
    %v70 = vstv %s69
    %v71 = vsub.f32 %v68, %v70
    %v72 = vmax.f32 %v57, 0.0
    %v73 = vmax.f32 %v64, 0.0
    %v74 = vmax.f32 %v71, 0.0
    %v75 = vmul.f32 %v72, %v72
    %v76 = vmul.f32 %v73, %v73
    %v78 = vrot.slane %v76, 1
    %v80 = vadd.f32 %v75, %v78
    %v81 = vmul.f32 %v74, %v74
    %v83 = vrot.slane %v81, 2
    %v85 = vadd.f32 %v80, %v83
    %v87 = vrot.slane %v64, 1
    %v89 = vmax.f32 %v57, %v87
    %v91 = vrot.slane %v71, 2
    %v93 = vmax.f32 %v89, %v91
    %v94 = vrsqrt.pop %v85
    %v95 = vmul.f32 %v85, %v94
    %vm96 = vcmp.eq.f32.partialorder %v85, inf
    %v97 = vsel %vm96, %v85, %v95
    %vm98 = vcmp.eq.f32.partialorder %v85, 0.0
    %v99 = vand.u32 %v85, 2147483648
    %v100 = vsel %vm98, %v99, %v97
    %v101 = vmin.f32 %v93, 0.0
    %v102 = vadd.f32 %v100, %v101
    %103 = vst [vmem:[#allocation9] sm:$0x1] %v102
    // Predicated region
    $region26: #{tpu_custom_call.1} parent=1 // pred_check
      _
    $region27: #{tpu_custom_call.1} parent=1 // pred_check_branch
      %105 = sbr.rel (0) target = $region29
    $region28: #{tpu_custom_call.1} parent=1 // pred_region
      %s107 = ssub.s32 16, 16
      %108 = vsyncadd [#allocation4], %s107
      %s110 = sshll.u32 [#allocation9], 4
      %s111 = int_to_ptr.vmem [resolvable:$true] %s110
      %113 = dma.vmem_to_hbm [thread:$0]  %s111, 16, %s3, [#allocation4]
    $region29: #{tpu_custom_call.1} parent=1 // pred_fallthru
      _
    // Predicated region
    $region30: #{tpu_custom_call.1} parent=1 // pred_check
      _
    $region31: #{tpu_custom_call.1} parent=1 // pred_check_branch
      %115 = sbr.rel (0) target = $region33
    $region32: #{tpu_custom_call.1} parent=1 // pred_region
      %116 = dma.done [#allocation4], 16
    $region33: #{tpu_custom_call.1} parent=1 // pred_fallthru
      _
    %117 = vsyncpa [#allocation3], 1
    %118 = vsyncpa [#allocation4], 1
    %119 = vsyncpa [#allocation5], 1
    %120 = vsyncpa [#allocation6], 1

</llo_original>
